<compile_context>
chip_gen: v5e
topology: v5e:2x2
jax: 0.10.0
libtpu: 0.0.40
codegen_flags: <defaults>
</compile_context>

<pallas_src>
import functools

import jax
import jax.numpy as jnp
from jax.experimental import pallas as pl
from jax.experimental.pallas import tpu as pltpu


def _largest_divisor_multiple(n, cap, multiple):
    """Largest divisor of `n` that is <= cap and a multiple of `multiple`.
    Falls back to `n` itself (a full dimension is always a legal block extent)."""
    best = None
    d = multiple
    limit = min(n, max(int(cap), 0))
    while d <= limit:
        if n % d == 0:
            best = d
        d += multiple
    return best if best is not None else n


# --------------------------------------------------------------------------
# connect == 'add'
# --------------------------------------------------------------------------
def _add_kernel(a_ref, b_ref, o_ref):
    o_ref[...] = a_ref[...] + b_ref[...]


def skip_connect_add(x_main, x_aux):
    assert x_main.shape == x_aux.shape, "add requires identical shapes"
    assert x_main.dtype == x_aux.dtype
    shape = x_main.shape

    # Lane-dense 2-D view: rows = leading dims, cols = product of trailing two.
    rows = 1
    for d in shape[:-2]:
        rows *= d
    cols = shape[-2] * shape[-1]
    a2 = x_main.reshape(rows, cols)
    b2 = x_aux.reshape(rows, cols)
    M, N = a2.shape
    itemsize = a2.dtype.itemsize

    # Target ~4 MiB per block (3 arrays x 2 pipeline buffers ~= 24 MiB, under
    # the 32 MiB scoped-VMEM limit we request below).
    block_budget = 4 * 1024 * 1024

    # First tile the lane axis only if a single full-width row group would blow
    # the budget; otherwise keep lanes fully dense (one unmasked vst stream).
    min_rows = 8 if M >= 8 else M
    if N * itemsize * min_rows > block_budget:
        max_cols = max(128, block_budget // max(1, min_rows * itemsize))
        tn = _largest_divisor_multiple(N, max_cols, 128)
    else:
        tn = N

    bytes_per_row = tn * itemsize
    max_rows = max(1, block_budget // max(1, bytes_per_row))
    tm = _largest_divisor_multiple(M, max_rows, 8)

    out2 = pl.pallas_call(
        _add_kernel,
        out_shape=jax.ShapeDtypeStruct((M, N), x_main.dtype),
        grid_spec=pltpu.PrefetchScalarGridSpec(
            num_scalar_prefetch=0,
            grid=(M // tm, N // tn),
            in_specs=[
                pl.BlockSpec((tm, tn), lambda i, j: (i, j)),
                pl.BlockSpec((tm, tn), lambda i, j: (i, j)),
            ],
            out_specs=pl.BlockSpec((tm, tn), lambda i, j: (i, j)),
        ),
        compiler_params=pltpu.CompilerParams(
            dimension_semantics=("parallel", "parallel"),
            vmem_limit_bytes=32 * 1024 * 1024,
        ),
    )(a2, b2)
    return out2.reshape(shape)


# --------------------------------------------------------------------------
# connect == 'cat'  (concatenate along the channel axis, dim=1 of NCHW)
# --------------------------------------------------------------------------
def _cat_kernel(a_ref, b_ref, o_ref, *, c1):
    # Blocks: a (1, C1, tc), b (1, C2, tc), o (1, C1+C2, tc).
    # Channel axis is never tiled, so these are plain static-slice copies; the
    # lane (T*F) axis is a full-width multiple of 128 -> unmasked stores.
    o_ref[:, :c1, :] = a_ref[...]
    o_ref[:, c1:, :] = b_ref[...]


def skip_connect_cat(x_main, x_aux):
    assert x_main.ndim == 4 and x_aux.ndim == 4
    B, C1, T, F = x_main.shape
    B2, C2, T2, F2 = x_aux.shape
    assert (B, T, F) == (B2, T2, F2), "cat requires matching B, T, F"
    assert x_main.dtype == x_aux.dtype
    TF = T * F
    Cout = C1 + C2

    # Lane-dense 3-D view: (B, C, T*F).  Tile only the lane axis (multiples of
    # 128) so every store is a full-width vst.
    a3 = x_main.reshape(B, C1, TF)
    b3 = x_aux.reshape(B, C2, TF)

    bytes_per_lane = (C1 + C2 + Cout) * x_main.dtype.itemsize
    max_cols = max(128, (8 * 1024 * 1024) // max(1, bytes_per_lane))
    tc = _largest_divisor_multiple(TF, max_cols, 128)

    kernel = functools.partial(_cat_kernel, c1=C1)
    out3 = pl.pallas_call(
        kernel,
        out_shape=jax.ShapeDtypeStruct((B, Cout, TF), x_main.dtype),
        grid_spec=pltpu.PrefetchScalarGridSpec(
            num_scalar_prefetch=0,
            grid=(B, TF // tc),
            in_specs=[
                pl.BlockSpec((1, C1, tc), lambda b, j: (b, 0, j)),
                pl.BlockSpec((1, C2, tc), lambda b, j: (b, 0, j)),
            ],
            out_specs=pl.BlockSpec((1, Cout, tc), lambda b, j: (b, 0, j)),
        ),
        compiler_params=pltpu.CompilerParams(
            dimension_semantics=("parallel", "parallel"),
            vmem_limit_bytes=32 * 1024 * 1024,
        ),
    )(a3, b3)
    return out3.reshape(B, Cout, T, F)


# --------------------------------------------------------------------------
# Module-level wrapper mirroring Skip_connect.forward
# --------------------------------------------------------------------------
def skip_connect(x_main, x_aux, connect):
    if connect == "add":
        return skip_connect_add(x_main, x_aux)
    elif connect == "cat":
        return skip_connect_cat(x_main, x_aux)
    raise ValueError(f"unknown connect mode: {connect!r}")


if __name__ == "__main__":
    key = jax.random.PRNGKey(0)
    k1, k2, k3 = jax.random.split(key, 3)

    B, C, T, F = 2, 4, 16, 16
    x_main = jax.random.normal(k1, (B, C, T, F), dtype=jnp.float32)
    x_aux_add = jax.random.normal(k2, (B, C, T, F), dtype=jnp.float32)
    x_aux_cat = jax.random.normal(k3, (B, 2 * C, T, F), dtype=jnp.float32)

    # 'add' mode
    out_add = skip_connect(x_main, x_aux_add, "add")
    out_add = jax.block_until_ready(out_add)
    ref_add = x_main + x_aux_add
    assert out_add.shape == (B, C, T, F)
    assert jnp.allclose(out_add, ref_add, atol=0.0, rtol=0.0)

    # 'cat' mode (aux may have a different channel count)
    out_cat = skip_connect(x_main, x_aux_cat, "cat")
    out_cat = jax.block_until_ready(out_cat)
    ref_cat = jnp.concatenate([x_main, x_aux_cat], axis=1)
    assert out_cat.shape == (B, 3 * C, T, F)
    assert jnp.allclose(out_cat, ref_cat, atol=0.0, rtol=0.0)

    print("KERNEL_OK")
</pallas_src>

<mosaic_0001>
module attributes {stable_mosaic.version = 11 : i64} {
  func.func @_add_kernel(%arg0: i32, %arg1: i32, %arg2: memref<8x256xf32, #tpu.memory_space<vmem>>, %arg3: memref<8x256xf32, #tpu.memory_space<vmem>>, %arg4: memref<8x256xf32, #tpu.memory_space<vmem>>) attributes {dimension_semantics = [#tpu.dimension_semantics<parallel>, #tpu.dimension_semantics<parallel>], iteration_bounds = array<i64: 1, 1>, scalar_prefetch = 0 : i64, scratch_operands = 0 : i64, tpu.core_type = #tpu.core_type<tc>, window_params = [{transform_indices = @transform_0, window_bounds = array<i64: 8, 256>}, {transform_indices = @transform_1, window_bounds = array<i64: 8, 256>}, {transform_indices = @transform_2, window_bounds = array<i64: 8, 256>}]} {
    %c0 = arith.constant 0 : index
    %c0_0 = arith.constant 0 : index
    %0 = vector.load %arg2[%c0, %c0_0] : memref<8x256xf32, #tpu.memory_space<vmem>>, vector<8x256xf32>
    %c0_1 = arith.constant 0 : index
    %c0_2 = arith.constant 0 : index
    %1 = vector.load %arg3[%c0_1, %c0_2] : memref<8x256xf32, #tpu.memory_space<vmem>>, vector<8x256xf32>
    %2 = arith.addf %0, %1 : vector<8x256xf32>
    %c0_3 = arith.constant 0 : index
    %c0_4 = arith.constant 0 : index
    %3 = vector.load %arg4[%c0_3, %c0_4] : memref<8x256xf32, #tpu.memory_space<vmem>>, vector<8x256xf32>
    tpu.vector_store %arg4[%c0_3, %c0_4], %2 {strides = array<i32>} : memref<8x256xf32, #tpu.memory_space<vmem>>, vector<8x256xf32>,
    return
  }
  func.func @transform_0(%arg0: i32, %arg1: i32) -> (i32, i32) {
    %c0_i32 = arith.constant 0 : i32
    return %arg0, %arg1 : i32, i32
  }
  func.func @transform_1(%arg0: i32, %arg1: i32) -> (i32, i32) {
    %c0_i32 = arith.constant 0 : i32
    return %arg0, %arg1 : i32, i32
  }
  func.func @transform_2(%arg0: i32, %arg1: i32) -> (i32, i32) {
    %c0_i32 = arith.constant 0 : i32
    return %arg0, %arg1 : i32, i32
  }
}

</mosaic_0001>

<llo_original>
// kernel: tpu_custom_call.1
$region0: #{tpu_custom_call.1}
  #allocation0 [shape = 'u32[]', space=smem, size = 0x4, offset = 0x4, fixed_abs, tag = 'smem constant byte address 0x4 - core index']
  #allocation1 [shape = 'u32[72,128]{1,0:T(1,128)}', space=vmem, size = 0x9000, scoped, tag = 'internal scratch']
  %s0 = inlined_call_operand.hbm [shape: f32[8,256], index: 0, kind: input, shape index: {}]
  %s1 = inlined_call_operand.hbm [shape: f32[8,256], index: 1, kind: input, shape index: {}]
  %s2 = inlined_call_operand.hbm [shape: f32[8,256], index: 2, kind: output, shape index: {}]
  %s3 = sld [smem:[#allocation0]]
  $region26: #{tpu_custom_call.1} parent=0
    _
  %s5 = ssub.s32 1, %s3
  %s6 = scalar_select 0, %s5, %s3
  $region1: #{tpu_custom_call.1} parent=0
    #allocation2 [shape = 'u8[8192]{0}', space=vmem, size = 0x2000, scoped, tag = 'input window, operand 0, single buffered']
    #allocation3 [shape = 's32[1]{0}', space=sflag, size = 0x4, scoped, tag = 'scoped memory for tpu_custom_call.1']
    #allocation4 [shape = 's32[1]{0}', space=sflag, size = 0x4, scoped, tag = 'scoped memory for tpu_custom_call.1']
    #allocation5 [shape = 'u8[8192]{0}', space=vmem, size = 0x2000, scoped, tag = 'input window, operand 1, single buffered']
    #allocation6 [shape = 's32[1]{0}', space=sflag, size = 0x4, scoped, tag = 'scoped memory for tpu_custom_call.1']
    #allocation7 [shape = 'u8[8192]{0}', space=vmem, size = 0x2000, scoped, tag = 'output window, operand 0, single buffered']
    %7 = vsyncpa [#allocation3], 0
    %8 = vsyncpa [#allocation6], 0
    %9 = vsyncpa [#allocation4], 0
    // Predicated region
    $region2: #{tpu_custom_call.1} parent=1 // pred_check
      _
    $region3: #{tpu_custom_call.1} parent=1 // pred_check_branch
      %11 = sbr.rel (0) target = $region5
    $region4: #{tpu_custom_call.1} parent=1 // pred_region
      %13 = vsyncadd [#allocation3], 0
      %s15 = sshll.u32 %s0, 4
      %s16 = int_to_ptr.hbm [resolvable:$true] %s15
      %s17 = sshll.u32 [#allocation2], 4
      %s18 = int_to_ptr.vmem [resolvable:$true] %s17
      %20 = dma.hbm_to_vmem [thread:$0]  %s16, 256, %s18, [#allocation3]
    $region5: #{tpu_custom_call.1} parent=1 // pred_fallthru
      _
    // Predicated region
    $region6: #{tpu_custom_call.1} parent=1 // pred_check
      _
    $region7: #{tpu_custom_call.1} parent=1 // pred_check_branch
      %22 = sbr.rel (0) target = $region9
    $region8: #{tpu_custom_call.1} parent=1 // pred_region
      %24 = vsyncadd [#allocation6], 0
      %s26 = sshll.u32 %s1, 4
      %s27 = int_to_ptr.hbm [resolvable:$true] %s26
      %s28 = sshll.u32 [#allocation5], 4
      %s29 = int_to_ptr.vmem [resolvable:$true] %s28
      %31 = dma.hbm_to_vmem [thread:$0]  %s27, 256, %s29, [#allocation6]
    $region9: #{tpu_custom_call.1} parent=1 // pred_fallthru
      _
    // Predicated region
    $region10: #{tpu_custom_call.1} parent=1 // pred_check
      _
    $region11: #{tpu_custom_call.1} parent=1 // pred_check_branch
      %33 = sbr.rel (0) target = $region13
    $region12: #{tpu_custom_call.1} parent=1 // pred_region
      %35 = dma.done [#allocation3], 256
    $region13: #{tpu_custom_call.1} parent=1 // pred_fallthru
      _
    // Predicated region
    $region14: #{tpu_custom_call.1} parent=1 // pred_check
      _
    $region15: #{tpu_custom_call.1} parent=1 // pred_check_branch
      %37 = sbr.rel (0) target = $region17
    $region16: #{tpu_custom_call.1} parent=1 // pred_region
      %39 = dma.done [#allocation6], 256
    $region17: #{tpu_custom_call.1} parent=1 // pred_fallthru
      _
    %v40 = vld [vmem:[#allocation2] sm:$0xff]
    %v41 = vld [vmem:[#allocation2 + $0x8] sm:$0xff]
    %v42 = vld [vmem:[#allocation5] sm:$0xff]
    %v43 = vld [vmem:[#allocation5 + $0x8] sm:$0xff]
    %v44 = vadd.f32 %v40, %v42
    %v45 = vadd.f32 %v41, %v43
    %46 = vst [vmem:[#allocation7] sm:$0xff] %v44
    %47 = vst [vmem:[#allocation7 + $0x8] sm:$0xff] %v45
    // Predicated region
    $region18: #{tpu_custom_call.1} parent=1 // pred_check
      _
    $region19: #{tpu_custom_call.1} parent=1 // pred_check_branch
      %49 = sbr.rel (0) target = $region21
    $region20: #{tpu_custom_call.1} parent=1 // pred_region
      %51 = vsyncadd [#allocation4], 0
      %s53 = sshll.u32 [#allocation7], 4
      %s54 = int_to_ptr.vmem [resolvable:$true] %s53
      %s55 = sshll.u32 %s2, 4
      %s56 = int_to_ptr.hbm [resolvable:$true] %s55
      %58 = dma.vmem_to_hbm [thread:$0]  %s54, 256, %s56, [#allocation4]
    $region21: #{tpu_custom_call.1} parent=1 // pred_fallthru
      _
    // Predicated region
    $region22: #{tpu_custom_call.1} parent=1 // pred_check
      _
    $region23: #{tpu_custom_call.1} parent=1 // pred_check_branch
      %60 = sbr.rel (0) target = $region25
    $region24: #{tpu_custom_call.1} parent=1 // pred_region
      %62 = dma.done [#allocation4], 256
    $region25: #{tpu_custom_call.1} parent=1 // pred_fallthru
      _
    %63 = vsyncpa [#allocation3], 1
    %64 = vsyncpa [#allocation6], 1
    %65 = vsyncpa [#allocation4], 1

</llo_original>
